<compile_context>
chip_gen: v7x
topology: tpu7x:2x2x1
jax: 0.10.0
libtpu: 0.0.40
codegen_flags: <defaults>
</compile_context>

<pallas_src>
import jax
import jax.numpy as jnp
from jax import lax
from jax.experimental import pallas as pl
from jax.experimental.pallas import tpu as pltpu

BN_EPS = 1e-5
INV_SQRT2 = 0.7071067811865476  # 1/sqrt(2)


def _vmem_capacity_bytes():
    """Per-core VMEM capacity; conservative (v7x) fallback if the query fails."""
    try:
        return int(pltpu.get_tpu_info().vmem_capacity_bytes)
    except Exception:
        return 64 * 1024 * 1024


def _pick_tiles(N, in_dim, out_dim, budget):
    """Choose (tn, tk, x_resident) under a VMEM byte budget.

    Buffers are f32 in VMEM (inputs arrive f32; the bf16 cast happens in-register
    just before the MXU) and are double-buffered by the BlockSpec pipeliner.
    """
    # Feature tile: MXU-shaped (256) if that still leaves >= 2 feature tiles, so the
    # "parallel" axis can shard across both TensorCores on v7x.
    if out_dim % 256 == 0 and out_dim // 256 >= 2:
        tn = 256
    elif out_dim % 128 == 0:
        tn = 128
    else:
        tn = out_dim  # small / irregular out_dim: single full-width tile

    def usage(tk, x_resident):
        x_cols = in_dim if x_resident else tk
        x_b = 2 * N * x_cols * 4      # x block (f32, double-buffered)
        w_b = 2 * tk * tn * 4         # W block
        o_b = 2 * N * tn * 4          # resident f32 output block
        gb = 2 * 2 * tn * 4           # gamma / beta
        return x_b + w_b + o_b + gb

    # Best: x resident + K axis collapsed (single dot per feature tile, no RMW).
    if usage(in_dim, True) <= budget:
        return tn, in_dim, True
    # Next: x resident, K tiled (prefer large tk to amortize the o_ref read-modify-
    # write, which matters most on v5e's single vector-store slot).
    for tk in (1024, 512, 256, 128):
        if in_dim % tk == 0 and usage(tk, True) <= budget:
            return tn, tk, True
    # Fallback: stream x from HBM over K (re-read once per feature tile).
    for tk in (1024, 512, 256, 128):
        if in_dim % tk == 0 and usage(tk, False) <= budget:
            return tn, tk, False
    # Last resort for irregular in_dim.
    return tn, in_dim, False


def _make_mlp_kernel(tk, in_dim, x_resident, mxu_dtype):
    def kernel(x_ref, w_ref, gamma_ref, beta_ref, o_ref):
        k = pl.program_id(1)
        nk = pl.num_programs(1)

        # ---- Linear (bias-free: bias cancels under training-mode BN) ----
        if x_resident and tk != in_dim:
            start = pl.multiple_of(k * tk, tk)
            x_blk = x_ref[:, pl.ds(start, tk)]
        else:
            x_blk = x_ref[...]
        y_part = jnp.dot(
            x_blk.astype(mxu_dtype),
            w_ref[...].astype(mxu_dtype),
            preferred_element_type=jnp.float32,
        )

        @pl.when(k == 0)
        def _():
            o_ref[...] = y_part       # first K step: overwrite (no zero-init pass)

        @pl.when(k > 0)
        def _():
            o_ref[...] += y_part      # accumulate into the resident f32 output block

        # ---- finalize: BatchNorm (batch stats, folded scale) + exact-erf GELU ----
        @pl.when(k == nk - 1)
        def _():
            y = o_ref[...]                                      # (N, tn) f32
            inv_n = 1.0 / y.shape[0]
            mean = jnp.sum(y, axis=0, keepdims=True) * inv_n    # (1, tn)
            centered = y - mean
            var = jnp.sum(centered * centered, axis=0, keepdims=True) * inv_n
            scale = gamma_ref[...] * lax.rsqrt(var + BN_EPS)    # (1, tn)
            y_bn = centered * scale + beta_ref[...]
            # GELU, exact erf form (PyTorch default approximate='none').
            o_ref[...] = 0.5 * y_bn * (1.0 + lax.erf(y_bn * INV_SQRT2))

    return kernel


def mlp_layer(x, w, b, gamma, beta, *, mxu_dtype=jnp.bfloat16):
    """Fused Linear -> BatchNorm1d(training) -> GELU.

    x: (N, in_dim) f32; w: (in_dim, out_dim) f32; b/gamma/beta: (1, out_dim) f32.
    `b` is accepted for API parity with nn.Linear but is unused inside the kernel:
    training-mode BatchNorm's batch-mean subtraction cancels a per-feature bias.
    """
    del b
    N, in_dim = x.shape
    out_dim = w.shape[1]

    vmem_cap = _vmem_capacity_bytes()
    budget = (vmem_cap * 11) // 20                 # ~55% of VMEM for pipelined buffers
    tn, tk, x_resident = _pick_tiles(N, in_dim, out_dim, budget)
    assert out_dim % tn == 0 and in_dim % tk == 0, "dims must divide tile sizes"
    n_feat, n_k = out_dim // tn, in_dim // tk

    if x_resident:
        # Constant index map -> DMA'd once, reused by every feature tile / K step.
        x_spec = pl.BlockSpec((N, in_dim), lambda j, k: (0, 0))
        x_reads = 1
    else:
        x_spec = pl.BlockSpec((N, tk), lambda j, k: (0, k))   # streamed over K
        x_reads = n_feat

    cost = pl.CostEstimate(
        flops=2 * N * in_dim * out_dim + 10 * N * out_dim,    # matmul + BN/GELU epilogue
        transcendentals=N * out_dim,                          # erf
        bytes_accessed=4 * (x_reads * N * in_dim + in_dim * out_dim
                            + N * out_dim + 2 * out_dim),
    )

    kernel = _make_mlp_kernel(tk, in_dim, x_resident, mxu_dtype)

    return pl.pallas_call(
        kernel,
        out_shape=jax.ShapeDtypeStruct((N, out_dim), jnp.float32),
        grid_spec=pltpu.PrefetchScalarGridSpec(
            num_scalar_prefetch=0,
            grid=(n_feat, n_k),                                    # reduction axis last
            in_specs=[
                x_spec,
                pl.BlockSpec((tk, tn), lambda j, k: (k, j)),       # W tile
                pl.BlockSpec((1, tn), lambda j, k: (0, j)),        # gamma
                pl.BlockSpec((1, tn), lambda j, k: (0, j)),        # beta
            ],
            out_specs=pl.BlockSpec((N, tn), lambda j, k: (0, j)),  # lane-dense, resident over K
        ),
        compiler_params=pltpu.CompilerParams(
            dimension_semantics=("parallel", "arbitrary"),
            vmem_limit_bytes=max(32 * 1024 * 1024, (vmem_cap * 3) // 4),
        ),
        cost_estimate=cost,
    )(x, w, gamma, beta)


def reference(x, w, b, gamma, beta, matmul_dtype=jnp.float32):
    """Pure-JAX reference matching the PyTorch module (bias included)."""
    y = jnp.dot(x.astype(matmul_dtype), w.astype(matmul_dtype),
                preferred_element_type=jnp.float32) + b
    mean = jnp.mean(y, axis=0, keepdims=True)
    var = jnp.mean((y - mean) ** 2, axis=0, keepdims=True)
    y = (y - mean) / jnp.sqrt(var + BN_EPS)
    y = y * gamma + beta
    return 0.5 * y * (1.0 + lax.erf(y * INV_SQRT2))


if __name__ == "__main__":
    # Small but lane-dense shapes: batch=8, in_dim=256, out_dim=256.
    # With these, the auto-tiler picks tn=128 (2 parallel feature tiles), tk=in_dim
    # (K axis collapsed) and a VMEM-resident x slab.
    N, IN_DIM, OUT_DIM = 8, 256, 256
    key = jax.random.PRNGKey(0)
    kx, kw, kb = jax.random.split(key, 3)

    x = jax.random.normal(kx, (N, IN_DIM), dtype=jnp.float32)

    # Parameter init shapes per nn.Linear(in,out) + nn.BatchNorm1d(out).
    bound = 1.0 / jnp.sqrt(IN_DIM)
    w = jax.random.uniform(kw, (IN_DIM, OUT_DIM), jnp.float32, -bound, bound)
    b = jax.random.uniform(kb, (1, OUT_DIM), jnp.float32, -bound, bound)
    gamma = jnp.ones((1, OUT_DIM), jnp.float32)   # BatchNorm weight init
    beta = jnp.zeros((1, OUT_DIM), jnp.float32)   # BatchNorm bias init

    out = mlp_layer(x, w, b, gamma, beta)
    jax.block_until_ready(out)
    assert out.shape == (N, OUT_DIM)

    # Tight check: reference with the same bf16 matmul operands -> validates the
    # bias cancellation and the fused BN/GELU epilogue almost exactly.
    ref_bf16 = reference(x, w, b, gamma, beta, matmul_dtype=jnp.bfloat16)
    assert jnp.allclose(out, ref_bf16, atol=5e-3, rtol=5e-3), "mismatch vs bf16 reference"

    # Loose check: full-f32 reference (bf16 MXU operands vs f32 math).
    ref_f32 = reference(x, w, b, gamma, beta)
    assert jnp.allclose(out, ref_f32, atol=3e-2, rtol=3e-2), "mismatch vs f32 reference"

    print("KERNEL_OK")
</pallas_src>

<mosaic_0001>
module attributes {stable_mosaic.version = 11 : i64} {
  func.func @kernel(%arg0: i32, %arg1: i32, %arg2: memref<8x256xf32, #tpu.memory_space<vmem>>, %arg3: memref<256x128xf32, #tpu.memory_space<vmem>>, %arg4: memref<1x128xf32, #tpu.memory_space<vmem>>, %arg5: memref<1x128xf32, #tpu.memory_space<vmem>>, %arg6: memref<8x128xf32, #tpu.memory_space<vmem>>) attributes {dimension_semantics = [#tpu.dimension_semantics<parallel>, #tpu.dimension_semantics<arbitrary>], iteration_bounds = array<i64: 2, 1>, scalar_prefetch = 0 : i64, scratch_operands = 0 : i64, tpu.core_type = #tpu.core_type<tc>, window_params = [{pipeline_mode = #tpu.pipeline_mode<synchronous>, transform_indices = @transform_0, window_bounds = array<i64: 8, 256>}, {transform_indices = @transform_1, window_bounds = array<i64: 256, 128>}, {transform_indices = @transform_2, window_bounds = array<i64: 1, 128>}, {transform_indices = @transform_3, window_bounds = array<i64: 1, 128>}, {transform_indices = @transform_4, window_bounds = array<i64: 8, 128>}]} {
    %c0 = arith.constant 0 : index
    %c0_0 = arith.constant 0 : index
    %0 = vector.load %arg2[%c0, %c0_0] : memref<8x256xf32, #tpu.memory_space<vmem>>, vector<8x256xf32>
    %1 = arith.truncf %0 : vector<8x256xf32> to vector<8x256xbf16>
    %c0_1 = arith.constant 0 : index
    %c0_2 = arith.constant 0 : index
    %2 = vector.load %arg3[%c0_1, %c0_2] : memref<256x128xf32, #tpu.memory_space<vmem>>, vector<256x128xf32>
    %3 = arith.truncf %2 : vector<256x128xf32> to vector<256x128xbf16>
    %cst = arith.constant dense<0.000000e+00> : vector<8x128xf32>
    %4 = tpu.matmul %1, %3, %cst {dimension_numbers = #tpu.dot_dimension_numbers<[1], [0], [0], [1], [0, 0, 1, 1], [], []>} : vector<8x256xbf16>, vector<256x128xbf16>, vector<8x128xf32> -> vector<8x128xf32>
    %c0_i32 = arith.constant 0 : i32
    %5 = arith.cmpi eq, %arg1, %c0_i32 : i32
    %6 = arith.extui %5 : i1 to i32
    %c0_i32_3 = arith.constant 0 : i32
    %7 = arith.cmpi ne, %6, %c0_i32_3 : i32
    scf.if %7 {
      %c0_8 = arith.constant 0 : index
      %c0_9 = arith.constant 0 : index
      %14 = vector.load %arg6[%c0_8, %c0_9] : memref<8x128xf32, #tpu.memory_space<vmem>>, vector<8x128xf32>
      tpu.vector_store %arg6[%c0_8, %c0_9], %4 {strides = array<i32>} : memref<8x128xf32, #tpu.memory_space<vmem>>, vector<8x128xf32>,
    } else {
    }
    %c0_i32_4 = arith.constant 0 : i32
    %8 = arith.cmpi sgt, %arg1, %c0_i32_4 : i32
    %9 = arith.extui %8 : i1 to i32
    %c0_i32_5 = arith.constant 0 : i32
    %10 = arith.cmpi ne, %9, %c0_i32_5 : i32
    scf.if %10 {
      %c0_8 = arith.constant 0 : index
      %c0_9 = arith.constant 0 : index
      %14 = vector.load %arg6[%c0_8, %c0_9] : memref<8x128xf32, #tpu.memory_space<vmem>>, vector<8x128xf32>
      %15 = arith.addf %14, %4 : vector<8x128xf32>
      %c0_10 = arith.constant 0 : index
      %c0_11 = arith.constant 0 : index
      %16 = vector.load %arg6[%c0_10, %c0_11] : memref<8x128xf32, #tpu.memory_space<vmem>>, vector<8x128xf32>
      tpu.vector_store %arg6[%c0_10, %c0_11], %15 {strides = array<i32>} : memref<8x128xf32, #tpu.memory_space<vmem>>, vector<8x128xf32>,
    } else {
    }
    %c0_i32_6 = arith.constant 0 : i32
    %11 = arith.cmpi eq, %arg1, %c0_i32_6 : i32
    %12 = arith.extui %11 : i1 to i32
    %c0_i32_7 = arith.constant 0 : i32
    %13 = arith.cmpi ne, %12, %c0_i32_7 : i32
    scf.if %13 {
      %c0_8 = arith.constant 0 : index
      %c0_9 = arith.constant 0 : index
      %14 = vector.load %arg6[%c0_8, %c0_9] : memref<8x128xf32, #tpu.memory_space<vmem>>, vector<8x128xf32>
      %cst_10 = arith.constant dense<0.000000e+00> : vector<128xf32>
      %15 = vector.multi_reduction <add>, %14, %cst_10 [0] : vector<8x128xf32> to vector<128xf32>
      %16 = vector.shape_cast %15 : vector<128xf32> to vector<1x128xf32>
      %cst_11 = arith.constant 1.250000e-01 : f32
      %17 = vector.broadcast %cst_11 : f32 to vector<1x128xf32>
      %18 = arith.mulf %16, %17 : vector<1x128xf32>
      %19 = vector.broadcast %18 : vector<1x128xf32> to vector<8x128xf32>
      %20 = arith.subf %14, %19 : vector<8x128xf32>
      %21 = arith.mulf %20, %20 : vector<8x128xf32>
      %cst_12 = arith.constant dense<0.000000e+00> : vector<128xf32>
      %22 = vector.multi_reduction <add>, %21, %cst_12 [0] : vector<8x128xf32> to vector<128xf32>
      %23 = vector.shape_cast %22 : vector<128xf32> to vector<1x128xf32>
      %cst_13 = arith.constant 1.250000e-01 : f32
      %24 = vector.broadcast %cst_13 : f32 to vector<1x128xf32>
      %25 = arith.mulf %23, %24 : vector<1x128xf32>
      %c0_14 = arith.constant 0 : index
      %c0_15 = arith.constant 0 : index
      %26 = vector.load %arg4[%c0_14, %c0_15] : memref<1x128xf32, #tpu.memory_space<vmem>>, vector<1x128xf32>
      %cst_16 = arith.constant 9.99999974E-6 : f32
      %27 = vector.broadcast %cst_16 : f32 to vector<1x128xf32>
      %28 = arith.addf %25, %27 : vector<1x128xf32>
      %29 = math.rsqrt %28 : vector<1x128xf32>
      %30 = arith.mulf %26, %29 : vector<1x128xf32>
      %31 = vector.broadcast %30 : vector<1x128xf32> to vector<8x128xf32>
      %32 = arith.mulf %20, %31 : vector<8x128xf32>
      %c0_17 = arith.constant 0 : index
      %c0_18 = arith.constant 0 : index
      %33 = vector.load %arg5[%c0_17, %c0_18] : memref<1x128xf32, #tpu.memory_space<vmem>>, vector<1x128xf32>
      %34 = vector.broadcast %33 : vector<1x128xf32> to vector<8x128xf32>
      %35 = arith.addf %32, %34 : vector<8x128xf32>
      %cst_19 = arith.constant 5.000000e-01 : f32
      %36 = vector.broadcast %cst_19 : f32 to vector<8x128xf32>
      %37 = arith.mulf %36, %35 : vector<8x128xf32>
      %cst_20 = arith.constant 0.707106769 : f32
      %38 = vector.broadcast %cst_20 : f32 to vector<8x128xf32>
      %39 = arith.mulf %35, %38 : vector<8x128xf32>
      %40 = math.erf %39 : vector<8x128xf32>
      %cst_21 = arith.constant 1.000000e+00 : f32
      %41 = vector.broadcast %cst_21 : f32 to vector<8x128xf32>
      %42 = arith.addf %41, %40 : vector<8x128xf32>
      %43 = arith.mulf %37, %42 : vector<8x128xf32>
      %c0_22 = arith.constant 0 : index
      %c0_23 = arith.constant 0 : index
      %44 = vector.load %arg6[%c0_22, %c0_23] : memref<8x128xf32, #tpu.memory_space<vmem>>, vector<8x128xf32>
      tpu.vector_store %arg6[%c0_22, %c0_23], %43 {strides = array<i32>} : memref<8x128xf32, #tpu.memory_space<vmem>>, vector<8x128xf32>,
    } else {
    }
    return
  }
  func.func @transform_0(%arg0: i32, %arg1: i32) -> (i32, i32) {
    %c0_i32 = arith.constant 0 : i32
    %c0_i32_0 = arith.constant 0 : i32
    %c0_i32_1 = arith.constant 0 : i32
    return %c0_i32, %c0_i32_0 : i32, i32
  }
  func.func @transform_1(%arg0: i32, %arg1: i32) -> (i32, i32) {
    %c0_i32 = arith.constant 0 : i32
    return %arg1, %arg0 : i32, i32
  }
  func.func @transform_2(%arg0: i32, %arg1: i32) -> (i32, i32) {
    %c0_i32 = arith.constant 0 : i32
    %c0_i32_0 = arith.constant 0 : i32
    return %c0_i32, %arg0 : i32, i32
  }
  func.func @transform_3(%arg0: i32, %arg1: i32) -> (i32, i32) {
    %c0_i32 = arith.constant 0 : i32
    %c0_i32_0 = arith.constant 0 : i32
    return %c0_i32, %arg0 : i32, i32
  }
  func.func @transform_4(%arg0: i32, %arg1: i32) -> (i32, i32) {
    %c0_i32 = arith.constant 0 : i32
    %c0_i32_0 = arith.constant 0 : i32
    return %c0_i32, %arg0 : i32, i32
  }
}

</mosaic_0001>

<llo_original>
// kernel: tpu_custom_call.1
$region0: #{tpu_custom_call.1}
  #allocation0 [shape = 'u32[]', space=smem, size = 0x4, offset = 0x4, fixed_abs, tag = 'smem constant byte address 0x4 - core index']
  #allocation1 [shape = 'u32[144,128]{1,0:T(1,128)}', space=vmem, size = 0x12000, scoped, tag = 'internal scratch']
  %s0 = inlined_call_operand.hbm [shape: f32[8,256], index: 0, kind: input, shape index: {}]
  %s1 = inlined_call_operand.hbm [shape: f32[256,256], index: 1, kind: input, shape index: {}]
  %s2 = inlined_call_operand.vmem [shape: f32[1,256], index: 2, kind: input, shape index: {}]
  %s3 = inlined_call_operand.vmem [shape: f32[1,256], index: 3, kind: input, shape index: {}]
  %s4 = inlined_call_operand.hbm [shape: f32[8,256], index: 4, kind: output, shape index: {}]
  %s5 = sld [smem:[#allocation0]]
  $region69: #{tpu_custom_call.1} parent=0
    _
  %s7 = ssub.s32 1, %s5
  %s8 = scalar_select 0, %s7, %s5
  $region1: #{tpu_custom_call.1} parent=0
    #allocation2 [shape = 'u8[8192]{0}', space=vmem, size = 0x2000, scoped, tag = 'input window, operand 0, single buffered']
    #allocation3 [shape = 's32[2]{0}', space=sflag, size = 0x8, scoped, tag = 'scoped memory for tpu_custom_call.1']
    #allocation4 [shape = 's32[2]{0}', space=sflag, size = 0x8, scoped, tag = 'scoped memory for tpu_custom_call.1']
    #allocation5 [shape = 'u8[262144]{0}', space=vmem, size = 0x40000, scoped, tag = 'input window, operand 1']
    #allocation6 [shape = 's32[2]{0}', space=sflag, size = 0x8, scoped, tag = 'scoped memory for tpu_custom_call.1']
    #allocation7 [shape = 'u8[8192]{0}', space=vmem, size = 0x2000, scoped, tag = 'output window, operand 0']
    %9 = vsyncpa [#allocation3], 0
    %10 = vsyncpa [#allocation6], 0
    %s11 = scalar_lea.sflag [#allocation6], 1
    %12 = vsyncpa %s11, 0
    %13 = vsyncpa [#allocation4], 0
    %s14 = scalar_lea.sflag [#allocation4], 1
    %15 = vsyncpa %s14, 0
    loop: start=0, step=1, limit=4
    $region2: #{tpu_custom_call.1} parent=1 // loop_pre_header
      _
    $region3: #{tpu_custom_call.1} parent=1 // loop_header
      %s17 = sphi 0, %s21
      %p18 = scmp.ge.s32.totalorder %s17, 4
      %s24 = sphi 0, %s36
      %s25 = sphi 0, %s32
      %s26 = sphi 0, %s24
      %s27 = sphi 0, %s25
      %s28 = sphi 0, %s26
      %s29 = sphi 0, %s27
      %s37 = sphi 0, %s37
      %s39 = sphi 0, %s37
      %s40 = sphi 0, %s39
      %s54 = sphi 0, %s40
      %s62 = sphi 0, %s64
      %s65 = sphi 0, %s62
      %s66 = sphi 0, %s65
      %s82 = sphi 0, %s66
      %s88 = sphi 0, %s90
      %s91 = sphi 0, %s88
      %s92 = sphi 0, %s91
      %s108 = sphi 0, %s92
      %s114 = sphi 0, %s116
      %s117 = sphi 0, %s114
      %s118 = sphi 0, %s117
      %s134 = sphi 0, %s118
      %s140 = sphi 0, %s142
      %s143 = sphi 0, %s140
      %s144 = sphi 0, %s143
      %s160 = sphi 0, %s144
    $region4: #{tpu_custom_call.1} parent=1 // loop_header_branch
      %20 = sbr.rel (%p18) target = $region8
    $region5: #{tpu_custom_call.1} parent=1 // loop_body
      %s22 = ssub.s32 %s17, 1
      %s23 = ssub.s32 %s17, 2
      %s30 = sadd.s32 1, %s25
      %p31 = scmp.ge.s32.totalorder %s30, 1
      %s32 = scalar_select %p31, 0, %s30
      %s33 = sadd.s32 1, %s24
      %s34 = scalar_select %p31, %s33, %s24
      %p35 = scmp.ge.s32.totalorder %s34, 2
      %s36 = scalar_select %p35, 0, %s34
      %s38 = sadd.s32 %s37, 1
      %p41 = scmp.eq.s32.totalorder %s17, 1
      %p42 = scmp.ne.s32.totalorder %s37, %s39
      %p43 = scmp.eq.s32.totalorder %s17, 0
      %p44 = por %p42, %p43
      %p45 = scmp.ne.s32.totalorder %s37, %s39
      %p46 = scmp.eq.s32.totalorder %s22, 1
      %p47 = por %p45, %p46
      %p48 = scmp.ne.s32.totalorder %s39, %s40
      %p49 = scmp.eq.s32.totalorder %s22, 0
      %p50 = por %p48, %p49
      %p51 = scmp.ne.s32.totalorder %s39, %s40
      %p52 = scmp.eq.s32.totalorder %s23, 1
      %p53 = por %p51, %p52
      %p55 = scmp.ne.s32.totalorder %s40, %s54
      %p56 = scmp.eq.s32.totalorder %s23, 0
      %p57 = por %p55, %p56
      %s58 = ssub.s32 %s25, %s32
      %s59 = ssub.s32 %s24, %s36
      %s60 = sor.u32 %s58, %s59
      %p61 = scmp.eq.s32.totalorder %s60, 0
      %s63 = sadd.s32 %s62, 1
      %s64 = scalar_select %p61, %s62, %s63
      %p67 = pneg %p61
      %p68 = scmp.eq.s32.totalorder %s17, 1
      %p69 = por %p67, %p68
      %p70 = scmp.ne.s32.totalorder %s62, %s65
      %p71 = scmp.eq.s32.totalorder %s17, 0
      %p72 = por %p70, %p71
      %p73 = scmp.ne.s32.totalorder %s62, %s65
      %p74 = scmp.eq.s32.totalorder %s22, 1
      %p75 = por %p73, %p74
      %p76 = scmp.ne.s32.totalorder %s65, %s66
      %p77 = scmp.eq.s32.totalorder %s22, 0
      %p78 = por %p76, %p77
      %p79 = scmp.ne.s32.totalorder %s65, %s66
      %p80 = scmp.eq.s32.totalorder %s23, 1
      %p81 = por %p79, %p80
      %p83 = scmp.ne.s32.totalorder %s66, %s82
      %p84 = scmp.eq.s32.totalorder %s23, 0
      %p85 = por %p83, %p84
      %s86 = ssub.s32 %s24, %s36
      %p87 = scmp.eq.s32.totalorder %s86, 0
      %s89 = sadd.s32 %s88, 1
      %s90 = scalar_select %p87, %s88, %s89
      %p93 = pneg %p87
      %p94 = scmp.eq.s32.totalorder %s17, 1
      %p95 = por %p93, %p94
      %p96 = scmp.ne.s32.totalorder %s88, %s91
      %p97 = scmp.eq.s32.totalorder %s17, 0
      %p98 = por %p96, %p97
      %p99 = scmp.ne.s32.totalorder %s88, %s91
      %p100 = scmp.eq.s32.totalorder %s22, 1
      %p101 = por %p99, %p100
      %p102 = scmp.ne.s32.totalorder %s91, %s92
      %p103 = scmp.eq.s32.totalorder %s22, 0
      %p104 = por %p102, %p103
      %p105 = scmp.ne.s32.totalorder %s91, %s92
      %p106 = scmp.eq.s32.totalorder %s23, 1
      %p107 = por %p105, %p106
      %p109 = scmp.ne.s32.totalorder %s92, %s108
      %p110 = scmp.eq.s32.totalorder %s23, 0
      %p111 = por %p109, %p110
      %s112 = ssub.s32 %s24, %s36
      %p113 = scmp.eq.s32.totalorder %s112, 0
      %s115 = sadd.s32 %s114, 1
      %s116 = scalar_select %p113, %s114, %s115
      %p119 = pneg %p113
      %p120 = scmp.eq.s32.totalorder %s17, 1
      %p121 = por %p119, %p120
      %p122 = scmp.ne.s32.totalorder %s114, %s117
      %p123 = scmp.eq.s32.totalorder %s17, 0
      %p124 = por %p122, %p123
      %p125 = scmp.ne.s32.totalorder %s114, %s117
      %p126 = scmp.eq.s32.totalorder %s22, 1
      %p127 = por %p125, %p126
      %p128 = scmp.ne.s32.totalorder %s117, %s118
      %p129 = scmp.eq.s32.totalorder %s22, 0
      %p130 = por %p128, %p129
      %p131 = scmp.ne.s32.totalorder %s117, %s118
      %p132 = scmp.eq.s32.totalorder %s23, 1
      %p133 = por %p131, %p132
      %p135 = scmp.ne.s32.totalorder %s118, %s134
      %p136 = scmp.eq.s32.totalorder %s23, 0
      %p137 = por %p135, %p136
      %s138 = ssub.s32 %s24, %s36
      %p139 = scmp.eq.s32.totalorder %s138, 0
      %s141 = sadd.s32 %s140, 1
      %s142 = scalar_select %p139, %s140, %s141
      %p145 = pneg %p139
      %p146 = scmp.eq.s32.totalorder %s17, 1
      %p147 = por %p145, %p146
      %p148 = scmp.ne.s32.totalorder %s140, %s143
      %p149 = scmp.eq.s32.totalorder %s17, 0
      %p150 = por %p148, %p149
      %p151 = scmp.ne.s32.totalorder %s140, %s143
      %p152 = scmp.eq.s32.totalorder %s22, 1
      %p153 = por %p151, %p152
      %p154 = scmp.ne.s32.totalorder %s143, %s144
      %p155 = scmp.eq.s32.totalorder %s22, 0
      %p156 = por %p154, %p155
      %p157 = scmp.ne.s32.totalorder %s143, %s144
      %p158 = scmp.eq.s32.totalorder %s23, 1
      %p159 = por %p157, %p158
      %p161 = scmp.ne.s32.totalorder %s144, %s160
      %p162 = scmp.eq.s32.totalorder %s23, 0
      %p163 = por %p161, %p162
      %p164 = scmp.le.s32.totalorder 1, %s17
      %p165 = scmp.lt.s32.totalorder %s17, 3
      %p166 = pnand %p164, %p165
      %p167 = pneg %p166
      // Predicated region
      $region9: #{tpu_custom_call.1} parent=5 // pred_check
        _
      $region10: #{tpu_custom_call.1} parent=5 // pred_check_branch
        %169 = sbr.rel (%p166) target = $region12
      $region11: #{tpu_custom_call.1} parent=5 // pred_region
        %s170 = ssub.s32 %s17, 1
        // Predicated region
        $region13: #{tpu_custom_call.1} parent=11 // pred_check
          %p171 = pneg %p50
        $region14: #{tpu_custom_call.1} parent=11 // pred_check_branch
          %173 = sbr.rel (%p171) target = $region16
        $region15: #{tpu_custom_call.1} parent=11 // pred_region
          %s175 = ssub.s32 256, 256
          %176 = vsyncadd [#allocation3], %s175
          %s178 = sshll.u32 [#allocation2], 4
          %s179 = int_to_ptr.vmem [resolvable:$true] %s178
          %181 = dma.hbm_to_vmem [thread:$0]  %s0, 256, %s179, [#allocation3]
        $region16: #{tpu_custom_call.1} parent=11 // pred_fallthru
          _
      $region12: #{tpu_custom_call.1} parent=5 // pred_fallthru
        _
      %p182 = scmp.lt.s32.totalorder %s17, 2
      // Predicated region
      $region17: #{tpu_custom_call.1} parent=5 // pred_check
        %p183 = pneg %p182
      $region18: #{tpu_custom_call.1} parent=5 // pred_check_branch
        %185 = sbr.rel (%p183) target = $region20
      $region19: #{tpu_custom_call.1} parent=5 // pred_region
        // Predicated region
        $region21: #{tpu_custom_call.1} parent=19 // pred_check
          %p186 = pneg %p72
        $region22: #{tpu_custom_call.1} parent=19 // pred_check_branch
          %188 = sbr.rel (%p186) target = $region24
        $region23: #{tpu_custom_call.1} parent=19 // pred_region
          %s189 = sand.u32 %s62, 1
          %s190 = scalar_lea.sflag [#allocation6], %s189
          %s191 = sand.u32 %s62, 1
          %s192 = smul.addr %s191, 256
          %s193 = scalar_lea.vmem [#allocation5], %s192
          %s194 = smul.u32 32, %s25
          %s196 = ssub.s32 4096, 4096
          %197 = vsyncadd %s190, %s196
          %s198 = smul.addr %s194, 2
          %s199 = sadd.s32 %s24, %s198
          %s200 = smul.addr %s199, 128
          %s201 = scalar_lea.hbm %s1, %s200
          %s202 = sshll.u32 %s193, 4
          %s203 = int_to_ptr.vmem [resolvable:$true] %s202
          %208 = dma.hbm_to_vmem [thread:$0]  %s201, 4096, %s203, %s190, 256, 128, 8
        $region24: #{tpu_custom_call.1} parent=19 // pred_fallthru
          _
        // Predicated region
        $region25: #{tpu_custom_call.1} parent=19 // pred_check
          %p209 = pneg %p98
        $region26: #{tpu_custom_call.1} parent=19 // pred_check_branch
          %211 = sbr.rel (%p209) target = $region28
        $region27: #{tpu_custom_call.1} parent=19 // pred_region
          %p212 = scmp.lt.s32.totalorder %s24, 1
          %s213 = scalar_select %p212, %s24, 1
          %s214 = scalar_lea.vmem %s2, %s213
        $region28: #{tpu_custom_call.1} parent=19 // pred_fallthru
          _
        // Predicated region
        $region29: #{tpu_custom_call.1} parent=19 // pred_check
          %p215 = pneg %p124
        $region30: #{tpu_custom_call.1} parent=19 // pred_check_branch
          %217 = sbr.rel (%p215) target = $region32
        $region31: #{tpu_custom_call.1} parent=19 // pred_region
          %p218 = scmp.lt.s32.totalorder %s24, 1
          %s219 = scalar_select %p218, %s24, 1
          %s220 = scalar_lea.vmem %s3, %s219
        $region32: #{tpu_custom_call.1} parent=19 // pred_fallthru
          _
      $region20: #{tpu_custom_call.1} parent=5 // pred_fallthru
        _
      %p221 = scmp.le.s32.totalorder 1, %s17
      %p222 = scmp.lt.s32.totalorder %s17, 3
      %p223 = pnand %p221, %p222
      %p224 = pneg %p223
      // Predicated region
      $region33: #{tpu_custom_call.1} parent=5 // pred_check
        _
      $region34: #{tpu_custom_call.1} parent=5 // pred_check_branch
        %226 = sbr.rel (%p223) target = $region36
      $region35: #{tpu_custom_call.1} parent=5 // pred_region
        %s227 = ssub.s32 %s17, 1
        // Predicated region
        $region37: #{tpu_custom_call.1} parent=35 // pred_check
          %p228 = pneg %p50
        $region38: #{tpu_custom_call.1} parent=35 // pred_check_branch
          %230 = sbr.rel (%p228) target = $region40
        $region39: #{tpu_custom_call.1} parent=35 // pred_region
          %231 = dma.done [#allocation3], 256
        $region40: #{tpu_custom_call.1} parent=35 // pred_fallthru
          _
        %s232 = sand.u32 %s65, 1
        %s233 = scalar_lea.sflag [#allocation6], %s232
        %s234 = sand.u32 %s65, 1
        %s235 = smul.addr %s234, 256
        %s236 = scalar_lea.vmem [#allocation5], %s235
        // Predicated region
        $region41: #{tpu_custom_call.1} parent=35 // pred_check
          %p237 = pneg %p78
        $region42: #{tpu_custom_call.1} parent=35 // pred_check_branch
          %239 = sbr.rel (%p237) target = $region44
        $region43: #{tpu_custom_call.1} parent=35 // pred_region
          %240 = dma.done %s233, 4096
        $region44: #{tpu_custom_call.1} parent=35 // pred_fallthru
          _
        %p241 = pneg %p50
        %p242 = pneg %p47
        %s243 = sand.u32 %s65, 1
        %s244 = scalar_lea.sflag [#allocation6], %s243
        %s245 = sand.u32 %s65, 1
        %s246 = smul.addr %s245, 256
        %s247 = scalar_lea.vmem [#allocation5], %s246
        %p248 = pneg %p78
        %p249 = pneg %p75
        %p250 = scmp.lt.s32.totalorder %s26, 1
        %s251 = scalar_select %p250, %s26, 1
        %s252 = scalar_lea.vmem %s2, %s251
        %p253 = pneg %p104
        %p254 = pneg %p101
        %p255 = scmp.lt.s32.totalorder %s26, 1
        %s256 = scalar_select %p255, %s26, 1
        %s257 = scalar_lea.vmem %s3, %s256
        %p258 = pneg %p130
        %p259 = pneg %p127
        %p260 = pneg %p156
        %p261 = pneg %p153
        %s262 = sand.u32 %s143, 1
        %s263 = scalar_lea.sflag [#allocation4], %s262
        %s264 = sand.u32 %s143, 1
        %s265 = smul.addr %s264, 8
        %s266 = scalar_lea.vmem [#allocation7], %s265
        %s267 = smul.u32 32, %s27
        %p268 = scmp.lt.s32.totalorder %s26, 1
        %s269 = scalar_select %p268, %s26, 1
        %s270 = scalar_lea.vmem %s2, %s269
        %p271 = scmp.lt.s32.totalorder %s26, 1
        %s272 = scalar_select %p271, %s26, 1
        %s273 = scalar_lea.vmem %s3, %s272
        %v275 = vld [vmem:[#allocation2] sm:$0xff]
        %v276 = vld [vmem:[#allocation2 + $0x8] sm:$0xff]
        %v277 = vpack.c.bf16 %v275, %v275
        %v278 = vpack.c.bf16 %v276, %v276
        %v279 = vld [vmem:[%s236] sm:$0xff]
        %v280 = vld [vmem:[%s236 + $0x8] sm:$0xff]
        %v281 = vld [vmem:[%s236 + $0x10] sm:$0xff]
        %v282 = vld [vmem:[%s236 + $0x18] sm:$0xff]
        %v283 = vld [vmem:[%s236 + $0x20] sm:$0xff]
        %v284 = vld [vmem:[%s236 + $0x28] sm:$0xff]
        %v285 = vld [vmem:[%s236 + $0x30] sm:$0xff]
        %v286 = vld [vmem:[%s236 + $0x38] sm:$0xff]
        %v287 = vld [vmem:[%s236 + $0x40] sm:$0xff]
        %v288 = vld [vmem:[%s236 + $0x48] sm:$0xff]
        %v289 = vld [vmem:[%s236 + $0x50] sm:$0xff]
        %v290 = vld [vmem:[%s236 + $0x58] sm:$0xff]
        %v291 = vld [vmem:[%s236 + $0x60] sm:$0xff]
        %v292 = vld [vmem:[%s236 + $0x68] sm:$0xff]
        %v293 = vld [vmem:[%s236 + $0x70] sm:$0xff]
        %v294 = vld [vmem:[%s236 + $0x78] sm:$0xff]
        %v295 = vld [vmem:[%s236 + $0x80] sm:$0xff]
        %v296 = vld [vmem:[%s236 + $0x88] sm:$0xff]
        %v297 = vld [vmem:[%s236 + $0x90] sm:$0xff]
        %v298 = vld [vmem:[%s236 + $0x98] sm:$0xff]
        %v299 = vld [vmem:[%s236 + $0xa0] sm:$0xff]
        %v300 = vld [vmem:[%s236 + $0xa8] sm:$0xff]
        %v301 = vld [vmem:[%s236 + $0xb0] sm:$0xff]
        %v302 = vld [vmem:[%s236 + $0xb8] sm:$0xff]
        %v303 = vld [vmem:[%s236 + $0xc0] sm:$0xff]
        %v304 = vld [vmem:[%s236 + $0xc8] sm:$0xff]
        %v305 = vld [vmem:[%s236 + $0xd0] sm:$0xff]
        %v306 = vld [vmem:[%s236 + $0xd8] sm:$0xff]
        %v307 = vld [vmem:[%s236 + $0xe0] sm:$0xff]
        %v308 = vld [vmem:[%s236 + $0xe8] sm:$0xff]
        %v309 = vld [vmem:[%s236 + $0xf0] sm:$0xff]
        %v310 = vld [vmem:[%s236 + $0xf8] sm:$0xff]
        %v311 = vpack.c.bf16 %v280, %v279
        %v312 = vpack.c.bf16 %v282, %v281
        %v313 = vpack.c.bf16 %v284, %v283
        %v314 = vpack.c.bf16 %v286, %v285
        %v315 = vpack.c.bf16 %v288, %v287
        %v316 = vpack.c.bf16 %v290, %v289
        %v317 = vpack.c.bf16 %v292, %v291
        %v318 = vpack.c.bf16 %v294, %v293
        %v319 = vpack.c.bf16 %v296, %v295
        %v320 = vpack.c.bf16 %v298, %v297
        %v321 = vpack.c.bf16 %v300, %v299
        %v322 = vpack.c.bf16 %v302, %v301
        %v323 = vpack.c.bf16 %v304, %v303
        %v324 = vpack.c.bf16 %v306, %v305
        %v325 = vpack.c.bf16 %v308, %v307
        %v326 = vpack.c.bf16 %v310, %v309
        %327 = vmatprep.subr.bf16.mxu0 0
        %328 = vmatpush1.bf16.msra.mxu0 %v311
        %329 = vmatprep.subr.bf16.mxu0 0
        %330 = vmatpush1.bf16.msra.mxu0 %v312
        %331 = vmatprep.subr.bf16.mxu0 0
        %332 = vmatpush1.bf16.msra.mxu0 %v313
        %333 = vmatprep.subr.bf16.mxu0 0
        %334 = vmatpush1.bf16.msra.mxu0 %v314
        %335 = vmatprep.subr.bf16.mxu0 0
        %336 = vmatpush1.bf16.msra.mxu0 %v315
        %337 = vmatprep.subr.bf16.mxu0 0
        %338 = vmatpush1.bf16.msra.mxu0 %v316
        %339 = vmatprep.subr.bf16.mxu0 0
        %340 = vmatpush1.bf16.msra.mxu0 %v317
        %341 = vmatprep.subr.bf16.mxu0 0
        %342 = vmatpush1.bf16.msra.mxu0 %v318
        %343 = vmatprep.subr.bf16.mxu0 0
        %344 = vmatpush1.bf16.msra.mxu0 %v319
        %345 = vmatprep.subr.bf16.mxu0 0
        %346 = vmatpush1.bf16.msra.mxu0 %v320
        %347 = vmatprep.subr.bf16.mxu0 0
        %348 = vmatpush1.bf16.msra.mxu0 %v321
        %349 = vmatprep.subr.bf16.mxu0 0
        %350 = vmatpush1.bf16.msra.mxu0 %v322
        %351 = vmatprep.subr.bf16.mxu0 0
        %352 = vmatpush1.bf16.msra.mxu0 %v323
        %353 = vmatprep.subr.bf16.mxu0 0
        %354 = vmatpush1.bf16.msra.mxu0 %v324
        %355 = vmatprep.subr.bf16.mxu0 0
        %356 = vmatpush1.bf16.msra.mxu0 %v325
        %357 = vmatprep.subr.bf16.mxu0 0
        %358 = vmatpush1.bf16.msra.mxu0 %v326
        %359 = vmatprep.mubr.bf16.mxu0 %v278
        %360 = vmatmul.mubr.bf16.gmra.mrb[0].mxu0 %v277
        %v361 = vpop.f32.mrb[0].mxu0
        %v362 = vadd.f32 0.0, %v361
        %v363 = vpop.f32.mrb[0].mxu0
        %v364 = vpop.f32.mrb[0].mxu0
        %v365 = vpop.f32.mrb[0].mxu0
        %366 = vdwg.mxu0
        %p367 = scmp.eq.s32.totalorder %s27, 0
        // Predicated region
        $region45: #{tpu_custom_call.1} parent=35 // pred_check
          %p368 = pneg %p367
        $region46: #{tpu_custom_call.1} parent=35 // pred_check_branch
          %370 = sbr.rel (%p368) target = $region48
        $region47: #{tpu_custom_call.1} parent=35 // pred_region
          %371 = vst [vmem:[%s266] sm:$0xff] %v362
        $region48: #{tpu_custom_call.1} parent=35 // pred_fallthru
          _
        %p372 = scmp.gt.s32.totalorder %s27, 0
        // Predicated region
        $region49: #{tpu_custom_call.1} parent=35 // pred_check
          %p373 = pneg %p372
        $region50: #{tpu_custom_call.1} parent=35 // pred_check_branch
          %375 = sbr.rel (%p373) target = $region52
        $region51: #{tpu_custom_call.1} parent=35 // pred_region
          %v376 = vld [vmem:[%s266] sm:$0xff]
          %v377 = vadd.f32 %v376, %v362
          %378 = vst [vmem:[%s266] sm:$0xff] %v377
        $region52: #{tpu_custom_call.1} parent=35 // pred_fallthru
          _
        // Predicated region
        $region53: #{tpu_custom_call.1} parent=35 // pred_check
          %p379 = pneg %p367
        $region54: #{tpu_custom_call.1} parent=35 // pred_check_branch
          %381 = sbr.rel (%p379) target = $region56
        $region55: #{tpu_custom_call.1} parent=35 // pred_region
          %v382 = vld [vmem:[%s266] sm:$0xff]
          %v383 = vrot.slane %v382, 4
          %v384 = vadd.f32 %v382, %v383
          %v385 = vrot.slane %v384, 2
          %v386 = vadd.f32 %v384, %v385
          %v387 = vrot.slane %v386, 1
          %v388 = vadd.f32 %v386, %v387
          %v389 = vmul.f32 %v388, 0.125
          %v390 = vsub.f32 %v382, %v389
          %v391 = vmul.f32 %v390, %v390
          %v392 = vrot.slane %v391, 4
          %v393 = vadd.f32 %v391, %v392
          %v394 = vrot.slane %v393, 2
          %v395 = vadd.f32 %v393, %v394
          %v396 = vrot.slane %v395, 1
          %v397 = vadd.f32 %v395, %v396
          %v398 = vmul.f32 %v397, 0.125
          %v399 = vld [vmem:[%s270] sm:$0x1]
          %v400 = vadd.f32 %v398, 1e-05
          %v401 = vrsqrt.pop %v400
          %v402 = vmul.f32 %v399, %v401
          %v404 = vlaneseq
          %v405 = vshrl.u32 %v404, 7
          %v406 = vsub.s32 0, %v405
          %v407 = vrot.slane %v402, %v406
          %v409 = vmul.f32 %v390, %v407
          %v410 = vld [vmem:[%s273] sm:$0x1]
          %v412 = vlaneseq
          %v413 = vshrl.u32 %v412, 7
          %v414 = vsub.s32 0, %v413
          %v415 = vrot.slane %v410, %v414
          %v417 = vadd.f32 %v409, %v415
          %v418 = vmul.f32 %v417, 0.5
          %v419 = vmul.f32 %v417, 0.70710677
          %v420 = verf.f32.pop %v419
          %v421 = vadd.f32 %v420, 1.0
          %v422 = vmul.f32 %v418, %v421
          %423 = vst [vmem:[%s266] sm:$0xff] %v422
        $region56: #{tpu_custom_call.1} parent=35 // pred_fallthru
          _
        %s424 = sand.u32 %s143, 1
        %s425 = scalar_lea.sflag [#allocation4], %s424
        %s426 = sand.u32 %s143, 1
        %s427 = smul.addr %s426, 8
        %s428 = scalar_lea.vmem [#allocation7], %s427
        // Predicated region
        $region57: #{tpu_custom_call.1} parent=35 // pred_check
          %p429 = pneg %p153
        $region58: #{tpu_custom_call.1} parent=35 // pred_check_branch
          %431 = sbr.rel (%p429) target = $region60
        $region59: #{tpu_custom_call.1} parent=35 // pred_region
          %s433 = ssub.s32 128, 128
          %434 = vsyncadd %s425, %s433
          %s435 = smul.addr %s26, 128
          %s436 = scalar_lea.hbm %s4, %s435
          %s438 = sshll.u32 %s428, 4
          %s439 = int_to_ptr.vmem [resolvable:$true] %s438
          %441 = dma.vmem_to_hbm [thread:$0]  %s439, 128, %s436, %s425
        $region60: #{tpu_custom_call.1} parent=35 // pred_fallthru
          _
      $region36: #{tpu_custom_call.1} parent=5 // pred_fallthru
        _
      %p442 = scmp.le.s32.totalorder 2, %s17
      // Predicated region
      $region61: #{tpu_custom_call.1} parent=5 // pred_check
        %p443 = pneg %p442
      $region62: #{tpu_custom_call.1} parent=5 // pred_check_branch
        %445 = sbr.rel (%p443) target = $region64
      $region63: #{tpu_custom_call.1} parent=5 // pred_region
        %s446 = ssub.s32 %s17, 2
        // Predicated region
        $region65: #{tpu_custom_call.1} parent=63 // pred_check
          %p447 = pneg %p159
        $region66: #{tpu_custom_call.1} parent=63 // pred_check_branch
          %449 = sbr.rel (%p447) target = $region68
        $region67: #{tpu_custom_call.1} parent=63 // pred_region
          %s450 = sand.u32 %s144, 1
          %s451 = scalar_lea.sflag [#allocation4], %s450
          %s452 = sand.u32 %s144, 1
          %s453 = smul.addr %s452, 8
          %s454 = scalar_lea.vmem [#allocation7], %s453
          %455 = dma.done %s451, 128
        $region68: #{tpu_custom_call.1} parent=63 // pred_fallthru
          _
      $region64: #{tpu_custom_call.1} parent=5 // pred_fallthru
        _
    $region6: #{tpu_custom_call.1} parent=1 // loop_footer
      %s21 = sadd.s32 1, %s17
    $region7: #{tpu_custom_call.1} parent=1 // loop_footer_branch
      %16 = sbr.rel target = $region3
    $region8: #{tpu_custom_call.1} parent=1 // loop_exit
      _
    %456 = vsyncpa [#allocation3], 1
    %s457 = scalar_lea.sflag [#allocation3], 1
    %458 = vsyncpa %s457, 1
    %459 = vsyncpa [#allocation6], 1
    %s460 = scalar_lea.sflag [#allocation6], 1
    %461 = vsyncpa %s460, 1
    %462 = vsyncpa [#allocation4], 1
    %s463 = scalar_lea.sflag [#allocation4], 1
    %464 = vsyncpa %s463, 1

</llo_original>
